<compile_context>
chip_gen: v5e
topology: v5e:2x2
jax: 0.10.0
libtpu: 0.0.40
codegen_flags: <defaults>
</compile_context>

<pallas_src>
import functools

import numpy as np
import jax
import jax.numpy as jnp
from jax import lax
from jax.experimental import pallas as pl
from jax.experimental.pallas import tpu as pltpu

BN_EPS = 1e-5


# ---------------------------------------------------------------------------
# Fused bottleneck kernel (one batch element per grid step)
# ---------------------------------------------------------------------------
def _bottleneck_kernel(x_ref, w1_ref, b1_ref, w2_ref, b2_ref, w3_ref, b3_ref,
                       ml_ref, mr_ref, o_ref, a1_ref, stk_ref, *, H, W, off):
    planes = w1_ref.shape[0]
    HW = H * W
    Lp = a1_ref.shape[1]
    head = off + W + 1                 # multiple of 128 by construction of `off`
    tail = (H + 1) * W + 1 + off       # first index past the stored interior

    # ---- conv1 (1x1) + bn1 + relu: channel-major matmul on the MXU ----------
    y1 = jnp.dot(w1_ref[...], x_ref[0].astype(jnp.bfloat16),
                 preferred_element_type=jnp.float32)
    y1 = jnp.maximum(y1 + b1_ref[...], 0.0).astype(jnp.bfloat16)     # (planes, HW)

    # ---- flat row buffer for the 3x3 conv ------------------------------------
    # Layout: a1[ci, (h+1)*W + 1 + w + off] = y1[ci, h*W + w].
    # Only top/bottom row padding is materialised (the zeroed head/tail regions);
    # the left/right column padding is emulated by masking the dx=0 / dx=2 tap
    # slabs below.  The interior write is ONE lane-aligned contiguous store; the
    # two tiny pad-zero stores are redone every grid step so scratch needs no
    # cross-step initialisation (safe if the grid is sharded across cores).
    a1_ref[:, :head] = jnp.zeros((planes, head), jnp.bfloat16)
    a1_ref[:, tail:] = jnp.zeros((planes, Lp - tail), jnp.bfloat16)
    a1_ref[:, head:head + HW] = y1

    # ---- build the tap-stacked conv2 operand: (9*planes, HW) -----------------
    # Tap (dy, dx) of the output at flat position p = h*W + w needs the padded
    # activation at flat-buffer index dy*W + dx + off + p; row-wrapped reads at
    # the image's left/right edges are zeroed by the lane masks.
    ml = ml_ref[...]          # (1, HW), zero where w == 0      (left padding)
    mr = mr_ref[...]          # (1, HW), zero where w == W - 1  (right padding)
    for dy in range(3):
        for dx in range(3):
            t = dy * 3 + dx
            s = dy * W + dx + off
            slab = a1_ref[:, s:s + HW]
            if dx == 0:
                slab = slab * ml
            elif dx == 2:
                slab = slab * mr
            stk_ref[t * planes:(t + 1) * planes, :] = slab

    # ---- conv2 (3x3, stride 1, pad 1) + bn2 + relu: ONE matmul, K = 9*planes --
    y2 = jnp.dot(w2_ref[...], stk_ref[...], preferred_element_type=jnp.float32)
    y2 = jnp.maximum(y2 + b2_ref[...], 0.0).astype(jnp.bfloat16)     # (planes, HW)

    # ---- conv3 (1x1) + bn3 + residual add + relu ------------------------------
    y3 = jnp.dot(w3_ref[...], y2, preferred_element_type=jnp.float32)
    y3 = y3 + b3_ref[...] + x_ref[0]      # re-read x here; no long-lived f32 copy
    o_ref[0] = jnp.maximum(y3, 0.0).astype(o_ref.dtype)


# ---------------------------------------------------------------------------
# BN folding / parameter preparation
# ---------------------------------------------------------------------------
def _fold_bn(gamma, beta, mean, var):
    scale = (gamma / jnp.sqrt(var + BN_EPS)).astype(jnp.float32)
    shift = (beta - mean * scale).astype(jnp.float32)
    return scale, shift


def _prepare_kernel_params(params):
    planes = params["w1"].shape[0]
    s1, t1 = _fold_bn(*params["bn1"])
    s2, t2 = _fold_bn(*params["bn2"])
    s3, t3 = _fold_bn(*params["bn3"])

    # Fold BN scale into conv weights, cast to bf16 for the MXU.
    w1k = (s1[:, None] * params["w1"]).astype(jnp.bfloat16)          # (planes, Cin)
    w2f = s2[:, None, None, None] * params["w2"]                     # OIHW
    # Tap-stacked layout: column (dy*3+dx)*planes + ci  <->  w2[co, ci, dy, dx]
    w2k = jnp.transpose(w2f, (0, 2, 3, 1)).reshape(planes, 9 * planes)
    w2k = w2k.astype(jnp.bfloat16)                                   # (planes, 9*planes)
    w3k = (s3[:, None] * params["w3"]).astype(jnp.bfloat16)          # (Cexp, planes)
    return w1k, t1[:, None], w2k, t2[:, None], w3k, t3[:, None]


def _vmem_limit_bytes():
    # v5e/v6e have 128 MiB physical VMEM per core, v7x only 64 MiB: size the
    # scoped limit from the hardware instead of hardcoding a v6e-style value.
    try:
        cap = int(pltpu.get_tpu_info().vmem_capacity_bytes)
    except Exception:
        cap = 64 * 1024 * 1024
    return min(cap * 3 // 4, 96 * 1024 * 1024)


# ---------------------------------------------------------------------------
# Public wrapper: NCHW in, NCHW out (no transposes; reshapes are metadata-only)
# ---------------------------------------------------------------------------
def bottleneck_forward(x_nchw, params):
    N, C, H, W = x_nchw.shape
    planes, cin = params["w1"].shape
    cexp = params["w3"].shape[0]
    if cin != C or cexp != 4 * planes or C != cexp:
        raise ValueError("identity-residual Bottleneck requires "
                         "inplanes == planes * expansion (stride=1, no downsample)")

    HW = H * W
    off = (-(W + 1)) % 128                               # makes off + W + 1 lane-aligned
    Lp = -(-((H + 2) * W + 2 + off) // 128) * 128        # flat row-padded buffer length

    w1k, b1, w2k, b2, w3k, b3 = _prepare_kernel_params(params)
    x3 = x_nchw.reshape(N, C, HW).astype(jnp.float32)

    # Lane masks emulating the left/right zero-padding for the dx=0 / dx=2 taps.
    w_idx = jnp.arange(HW, dtype=jnp.int32) % W
    mask_l = (w_idx != 0).astype(jnp.bfloat16)[None, :]          # (1, HW)
    mask_r = (w_idx != W - 1).astype(jnp.bfloat16)[None, :]      # (1, HW)

    flops = 2 * N * HW * (C * planes + 9 * planes * planes + planes * cexp)
    bytes_accessed = ((N * C * HW + N * cexp * HW) * 4
                      + (planes * C + planes * 9 * planes + cexp * planes) * 2
                      + (2 * planes + cexp) * 4 + 2 * HW * 2)

    kernel = functools.partial(_bottleneck_kernel, H=H, W=W, off=off)
    out = pl.pallas_call(
        kernel,
        out_shape=jax.ShapeDtypeStruct((N, cexp, HW), jnp.float32),
        grid=(N,),
        in_specs=[
            pl.BlockSpec((1, C, HW), lambda n: (n, 0, 0)),
            pl.BlockSpec((planes, C), lambda n: (0, 0)),
            pl.BlockSpec((planes, 1), lambda n: (0, 0)),
            pl.BlockSpec((planes, 9 * planes), lambda n: (0, 0)),
            pl.BlockSpec((planes, 1), lambda n: (0, 0)),
            pl.BlockSpec((cexp, planes), lambda n: (0, 0)),
            pl.BlockSpec((cexp, 1), lambda n: (0, 0)),
            pl.BlockSpec((1, HW), lambda n: (0, 0)),
            pl.BlockSpec((1, HW), lambda n: (0, 0)),
        ],
        out_specs=pl.BlockSpec((1, cexp, HW), lambda n: (n, 0, 0)),
        scratch_shapes=[
            pltpu.VMEM((planes, Lp), jnp.bfloat16),       # row-padded conv1 output buffer
            pltpu.VMEM((9 * planes, HW), jnp.bfloat16),   # tap-stacked conv2 operand
        ],
        compiler_params=pltpu.CompilerParams(
            dimension_semantics=("parallel",),
            vmem_limit_bytes=_vmem_limit_bytes()),
        cost_estimate=pl.CostEstimate(
            flops=int(flops), transcendentals=0, bytes_accessed=int(bytes_accessed)),
    )(x3, w1k, b1, w2k, b2, w3k, b3, mask_l, mask_r)
    return out.reshape(N, cexp, H, W)


# ---------------------------------------------------------------------------
# Pure-JAX reference with the SAME numerics (bf16 operands, f32 accumulation)
# ---------------------------------------------------------------------------
def reference_forward(x_nchw, params):
    dn = ("NCHW", "OIHW", "NCHW")
    f32 = jnp.float32
    x = x_nchw.astype(f32)

    s1, t1 = _fold_bn(*params["bn1"])
    s2, t2 = _fold_bn(*params["bn2"])
    s3, t3 = _fold_bn(*params["bn3"])

    w1 = (s1[:, None] * params["w1"]).astype(jnp.bfloat16)[..., None, None]
    w2 = (s2[:, None, None, None] * params["w2"]).astype(jnp.bfloat16)
    w3 = (s3[:, None] * params["w3"]).astype(jnp.bfloat16)[..., None, None]

    o = lax.conv_general_dilated(x.astype(jnp.bfloat16), w1, (1, 1), "VALID",
                                 dimension_numbers=dn, preferred_element_type=f32)
    o = jnp.maximum(o + t1[None, :, None, None], 0.0)
    o = lax.conv_general_dilated(o.astype(jnp.bfloat16), w2, (1, 1), ((1, 1), (1, 1)),
                                 dimension_numbers=dn, preferred_element_type=f32)
    o = jnp.maximum(o + t2[None, :, None, None], 0.0)
    o = lax.conv_general_dilated(o.astype(jnp.bfloat16), w3, (1, 1), "VALID",
                                 dimension_numbers=dn, preferred_element_type=f32)
    o = o + t3[None, :, None, None] + x
    return jnp.maximum(o, 0.0)


# ---------------------------------------------------------------------------
# Deterministic parameter construction
# ---------------------------------------------------------------------------
def make_params(key, inplanes, planes):
    expansion = 4
    ks = jax.random.split(key, 6)

    def bn(k, c):
        k1, k2, k3, k4 = jax.random.split(k, 4)
        gamma = 1.0 + 0.1 * jax.random.normal(k1, (c,), jnp.float32)
        beta = 0.1 * jax.random.normal(k2, (c,), jnp.float32)
        mean = 0.1 * jax.random.normal(k3, (c,), jnp.float32)
        var = jnp.abs(0.5 + 0.1 * jax.random.normal(k4, (c,), jnp.float32))
        return (gamma, beta, mean, var)

    return {
        # conv1: 1x1, inplanes -> planes, stored (Cout, Cin)
        "w1": 0.1 * jax.random.normal(ks[0], (planes, inplanes), jnp.float32),
        # conv2: 3x3, planes -> planes, stored OIHW
        "w2": 0.1 * jax.random.normal(ks[1], (planes, planes, 3, 3), jnp.float32),
        # conv3: 1x1, planes -> planes*expansion, stored (Cout, Cin)
        "w3": 0.1 * jax.random.normal(ks[2], (planes * expansion, planes), jnp.float32),
        "bn1": bn(ks[3], planes),
        "bn2": bn(ks[4], planes),
        "bn3": bn(ks[5], planes * expansion),
    }


if __name__ == "__main__":
    key = jax.random.PRNGKey(0)
    k_x, k_p = jax.random.split(key)

    # Small shapes: batch=2, inplanes=32 (= planes*expansion so the identity
    # residual matches), planes=8, spatial 16x16, stride=1, downsample=None.
    N, inplanes, planes, H, W = 2, 32, 8, 16, 16
    x = jax.random.normal(k_x, (N, inplanes, H, W), jnp.float32)   # NCHW, like PyTorch
    params = make_params(k_p, inplanes, planes)

    out = jax.jit(bottleneck_forward)(x, params)
    out = jax.block_until_ready(out)

    ref = jax.block_until_ready(jax.jit(reference_forward)(x, params))
    np.testing.assert_allclose(np.asarray(out), np.asarray(ref),
                               rtol=1e-3, atol=1e-3)
    assert out.shape == (N, planes * 4, H, W)

    print("KERNEL_OK")
</pallas_src>

<mosaic_0001>
module attributes {stable_mosaic.version = 11 : i64} {
  func.func @_bottleneck_kernel(%arg0: i32, %arg1: memref<1x32x256xf32, #tpu.memory_space<vmem>>, %arg2: memref<8x32xbf16, #tpu.memory_space<vmem>>, %arg3: memref<8x1xf32, #tpu.memory_space<vmem>>, %arg4: memref<8x72xbf16, #tpu.memory_space<vmem>>, %arg5: memref<8x1xf32, #tpu.memory_space<vmem>>, %arg6: memref<32x8xbf16, #tpu.memory_space<vmem>>, %arg7: memref<32x1xf32, #tpu.memory_space<vmem>>, %arg8: memref<1x256xbf16, #tpu.memory_space<vmem>>, %arg9: memref<1x256xbf16, #tpu.memory_space<vmem>>, %arg10: memref<1x32x256xf32, #tpu.memory_space<vmem>>, %arg11: memref<8x512xbf16, #tpu.memory_space<vmem>>, %arg12: memref<72x256xbf16, #tpu.memory_space<vmem>>) attributes {dimension_semantics = [#tpu.dimension_semantics<parallel>], iteration_bounds = array<i64: 2>, scalar_prefetch = 0 : i64, scratch_operands = 2 : i64, tpu.core_type = #tpu.core_type<tc>, window_params = [{transform_indices = @transform_0, window_bounds = array<i64: 1, 32, 256>}, {pipeline_mode = #tpu.pipeline_mode<synchronous>, transform_indices = @transform_1, window_bounds = array<i64: 8, 32>}, {pipeline_mode = #tpu.pipeline_mode<synchronous>, transform_indices = @transform_2, window_bounds = array<i64: 8, 1>}, {pipeline_mode = #tpu.pipeline_mode<synchronous>, transform_indices = @transform_3, window_bounds = array<i64: 8, 72>}, {pipeline_mode = #tpu.pipeline_mode<synchronous>, transform_indices = @transform_4, window_bounds = array<i64: 8, 1>}, {pipeline_mode = #tpu.pipeline_mode<synchronous>, transform_indices = @transform_5, window_bounds = array<i64: 32, 8>}, {pipeline_mode = #tpu.pipeline_mode<synchronous>, transform_indices = @transform_6, window_bounds = array<i64: 32, 1>}, {pipeline_mode = #tpu.pipeline_mode<synchronous>, transform_indices = @transform_7, window_bounds = array<i64: 1, 256>}, {pipeline_mode = #tpu.pipeline_mode<synchronous>, transform_indices = @transform_8, window_bounds = array<i64: 1, 256>}, {transform_indices = @transform_9, window_bounds = array<i64: 1, 32, 256>}]} {
    %c0 = arith.constant 0 : index
    %c0_0 = arith.constant 0 : index
    %0 = vector.load %arg2[%c0, %c0_0] : memref<8x32xbf16, #tpu.memory_space<vmem>>, vector<8x32xbf16>
    %c0_1 = arith.constant 0 : index
    %c0_2 = arith.constant 0 : index
    %c0_3 = arith.constant 0 : index
    %1 = vector.load %arg1[%c0_1, %c0_2, %c0_3] : memref<1x32x256xf32, #tpu.memory_space<vmem>>, vector<1x32x256xf32>
    %2 = vector.shape_cast %1 : vector<1x32x256xf32> to vector<32x256xf32>
    %3 = arith.truncf %2 : vector<32x256xf32> to vector<32x256xbf16>
    %cst = arith.constant dense<0.000000e+00> : vector<8x256xf32>
    %4 = tpu.matmul %0, %3, %cst {dimension_numbers = #tpu.dot_dimension_numbers<[1], [0], [0], [1], [0, 0, 1, 1], [], []>} : vector<8x32xbf16>, vector<32x256xbf16>, vector<8x256xf32> -> vector<8x256xf32>
    %c0_4 = arith.constant 0 : index
    %c0_5 = arith.constant 0 : index
    %5 = vector.load %arg3[%c0_4, %c0_5] : memref<8x1xf32, #tpu.memory_space<vmem>>, vector<8x1xf32>
    %6 = vector.broadcast %5 : vector<8x1xf32> to vector<8x256xf32>
    %7 = arith.addf %4, %6 : vector<8x256xf32>
    %cst_6 = arith.constant 0.000000e+00 : f32
    %8 = vector.broadcast %cst_6 : f32 to vector<8x256xf32>
    %9 = arith.maximumf %7, %8 : vector<8x256xf32>
    %10 = arith.truncf %9 : vector<8x256xf32> to vector<8x256xbf16>
    %cst_7 = arith.constant 0.000000e+00 : bf16
    %11 = vector.broadcast %cst_7 : bf16 to vector<8x128xbf16>
    %c0_8 = arith.constant 0 : index
    %c0_9 = arith.constant 0 : index
    %12 = vector.load %arg11[%c0_8, %c0_9] : memref<8x512xbf16, #tpu.memory_space<vmem>>, vector<8x128xbf16>
    tpu.vector_store %arg11[%c0_8, %c0_9], %11 {strides = array<i32>} : memref<8x512xbf16, #tpu.memory_space<vmem>>, vector<8x128xbf16>,
    %cst_10 = arith.constant 0.000000e+00 : bf16
    %13 = vector.broadcast %cst_10 : bf16 to vector<8x128xbf16>
    %c0_11 = arith.constant 0 : index
    %c384 = arith.constant 384 : index
    %14 = vector.load %arg11[%c0_11, %c384] : memref<8x512xbf16, #tpu.memory_space<vmem>>, vector<8x128xbf16>
    tpu.vector_store %arg11[%c0_11, %c384], %13 {strides = array<i32>} : memref<8x512xbf16, #tpu.memory_space<vmem>>, vector<8x128xbf16>,
    %c0_12 = arith.constant 0 : index
    %c128 = arith.constant 128 : index
    %15 = vector.load %arg11[%c0_12, %c128] : memref<8x512xbf16, #tpu.memory_space<vmem>>, vector<8x256xbf16>
    tpu.vector_store %arg11[%c0_12, %c128], %10 {strides = array<i32>} : memref<8x512xbf16, #tpu.memory_space<vmem>>, vector<8x256xbf16>,
    %c0_13 = arith.constant 0 : index
    %c0_14 = arith.constant 0 : index
    %16 = vector.load %arg8[%c0_13, %c0_14] : memref<1x256xbf16, #tpu.memory_space<vmem>>, vector<1x256xbf16>
    %c0_15 = arith.constant 0 : index
    %c0_16 = arith.constant 0 : index
    %17 = vector.load %arg9[%c0_15, %c0_16] : memref<1x256xbf16, #tpu.memory_space<vmem>>, vector<1x256xbf16>
    %c0_17 = arith.constant 0 : index
    %c111 = arith.constant 111 : index
    %18 = vector.load %arg11[%c0_17, %c111] : memref<8x512xbf16, #tpu.memory_space<vmem>>, vector<8x256xbf16>
    %19 = vector.broadcast %16 : vector<1x256xbf16> to vector<8x256xbf16>
    %20 = arith.mulf %18, %19 : vector<8x256xbf16>
    %c0_18 = arith.constant 0 : index
    %c0_19 = arith.constant 0 : index
    %21 = vector.load %arg12[%c0_18, %c0_19] : memref<72x256xbf16, #tpu.memory_space<vmem>>, vector<8x256xbf16>
    tpu.vector_store %arg12[%c0_18, %c0_19], %20 {strides = array<i32>} : memref<72x256xbf16, #tpu.memory_space<vmem>>, vector<8x256xbf16>,
    %c0_20 = arith.constant 0 : index
    %c112 = arith.constant 112 : index
    %22 = vector.load %arg11[%c0_20, %c112] : memref<8x512xbf16, #tpu.memory_space<vmem>>, vector<8x256xbf16>
    %c8 = arith.constant 8 : index
    %c0_21 = arith.constant 0 : index
    %23 = vector.load %arg12[%c8, %c0_21] : memref<72x256xbf16, #tpu.memory_space<vmem>>, vector<8x256xbf16>
    tpu.vector_store %arg12[%c8, %c0_21], %22 {strides = array<i32>} : memref<72x256xbf16, #tpu.memory_space<vmem>>, vector<8x256xbf16>,
    %c0_22 = arith.constant 0 : index
    %c113 = arith.constant 113 : index
    %24 = vector.load %arg11[%c0_22, %c113] : memref<8x512xbf16, #tpu.memory_space<vmem>>, vector<8x256xbf16>
    %25 = vector.broadcast %17 : vector<1x256xbf16> to vector<8x256xbf16>
    %26 = arith.mulf %24, %25 : vector<8x256xbf16>
    %c16 = arith.constant 16 : index
    %c0_23 = arith.constant 0 : index
    %27 = vector.load %arg12[%c16, %c0_23] : memref<72x256xbf16, #tpu.memory_space<vmem>>, vector<8x256xbf16>
    tpu.vector_store %arg12[%c16, %c0_23], %26 {strides = array<i32>} : memref<72x256xbf16, #tpu.memory_space<vmem>>, vector<8x256xbf16>,
    %c0_24 = arith.constant 0 : index
    %c127 = arith.constant 127 : index
    %28 = vector.load %arg11[%c0_24, %c127] : memref<8x512xbf16, #tpu.memory_space<vmem>>, vector<8x256xbf16>
    %29 = vector.broadcast %16 : vector<1x256xbf16> to vector<8x256xbf16>
    %30 = arith.mulf %28, %29 : vector<8x256xbf16>
    %c24 = arith.constant 24 : index
    %c0_25 = arith.constant 0 : index
    %31 = vector.load %arg12[%c24, %c0_25] : memref<72x256xbf16, #tpu.memory_space<vmem>>, vector<8x256xbf16>
    tpu.vector_store %arg12[%c24, %c0_25], %30 {strides = array<i32>} : memref<72x256xbf16, #tpu.memory_space<vmem>>, vector<8x256xbf16>,
    %c0_26 = arith.constant 0 : index
    %c128_27 = arith.constant 128 : index
    %32 = vector.load %arg11[%c0_26, %c128_27] : memref<8x512xbf16, #tpu.memory_space<vmem>>, vector<8x256xbf16>
    %c32 = arith.constant 32 : index
    %c0_28 = arith.constant 0 : index
    %33 = vector.load %arg12[%c32, %c0_28] : memref<72x256xbf16, #tpu.memory_space<vmem>>, vector<8x256xbf16>
    tpu.vector_store %arg12[%c32, %c0_28], %32 {strides = array<i32>} : memref<72x256xbf16, #tpu.memory_space<vmem>>, vector<8x256xbf16>,
    %c0_29 = arith.constant 0 : index
    %c129 = arith.constant 129 : index
    %34 = vector.load %arg11[%c0_29, %c129] : memref<8x512xbf16, #tpu.memory_space<vmem>>, vector<8x256xbf16>
    %35 = vector.broadcast %17 : vector<1x256xbf16> to vector<8x256xbf16>
    %36 = arith.mulf %34, %35 : vector<8x256xbf16>
    %c40 = arith.constant 40 : index
    %c0_30 = arith.constant 0 : index
    %37 = vector.load %arg12[%c40, %c0_30] : memref<72x256xbf16, #tpu.memory_space<vmem>>, vector<8x256xbf16>
    tpu.vector_store %arg12[%c40, %c0_30], %36 {strides = array<i32>} : memref<72x256xbf16, #tpu.memory_space<vmem>>, vector<8x256xbf16>,
    %c0_31 = arith.constant 0 : index
    %c143 = arith.constant 143 : index
    %38 = vector.load %arg11[%c0_31, %c143] : memref<8x512xbf16, #tpu.memory_space<vmem>>, vector<8x256xbf16>
    %39 = vector.broadcast %16 : vector<1x256xbf16> to vector<8x256xbf16>
    %40 = arith.mulf %38, %39 : vector<8x256xbf16>
    %c48 = arith.constant 48 : index
    %c0_32 = arith.constant 0 : index
    %41 = vector.load %arg12[%c48, %c0_32] : memref<72x256xbf16, #tpu.memory_space<vmem>>, vector<8x256xbf16>
    tpu.vector_store %arg12[%c48, %c0_32], %40 {strides = array<i32>} : memref<72x256xbf16, #tpu.memory_space<vmem>>, vector<8x256xbf16>,
    %c0_33 = arith.constant 0 : index
    %c144 = arith.constant 144 : index
    %42 = vector.load %arg11[%c0_33, %c144] : memref<8x512xbf16, #tpu.memory_space<vmem>>, vector<8x256xbf16>
    %c56 = arith.constant 56 : index
    %c0_34 = arith.constant 0 : index
    %43 = vector.load %arg12[%c56, %c0_34] : memref<72x256xbf16, #tpu.memory_space<vmem>>, vector<8x256xbf16>
    tpu.vector_store %arg12[%c56, %c0_34], %42 {strides = array<i32>} : memref<72x256xbf16, #tpu.memory_space<vmem>>, vector<8x256xbf16>,
    %c0_35 = arith.constant 0 : index
    %c145 = arith.constant 145 : index
    %44 = vector.load %arg11[%c0_35, %c145] : memref<8x512xbf16, #tpu.memory_space<vmem>>, vector<8x256xbf16>
    %45 = vector.broadcast %17 : vector<1x256xbf16> to vector<8x256xbf16>
    %46 = arith.mulf %44, %45 : vector<8x256xbf16>
    %c64 = arith.constant 64 : index
    %c0_36 = arith.constant 0 : index
    %47 = vector.load %arg12[%c64, %c0_36] : memref<72x256xbf16, #tpu.memory_space<vmem>>, vector<8x256xbf16>
    tpu.vector_store %arg12[%c64, %c0_36], %46 {strides = array<i32>} : memref<72x256xbf16, #tpu.memory_space<vmem>>, vector<8x256xbf16>,
    %c0_37 = arith.constant 0 : index
    %c0_38 = arith.constant 0 : index
    %48 = vector.load %arg4[%c0_37, %c0_38] : memref<8x72xbf16, #tpu.memory_space<vmem>>, vector<8x72xbf16>
    %c0_39 = arith.constant 0 : index
    %c0_40 = arith.constant 0 : index
    %49 = vector.load %arg12[%c0_39, %c0_40] : memref<72x256xbf16, #tpu.memory_space<vmem>>, vector<72x256xbf16>
    %cst_41 = arith.constant dense<0.000000e+00> : vector<8x256xf32>
    %50 = tpu.matmul %48, %49, %cst_41 {dimension_numbers = #tpu.dot_dimension_numbers<[1], [0], [0], [1], [0, 0, 1, 1], [], []>} : vector<8x72xbf16>, vector<72x256xbf16>, vector<8x256xf32> -> vector<8x256xf32>
    %c0_42 = arith.constant 0 : index
    %c0_43 = arith.constant 0 : index
    %51 = vector.load %arg5[%c0_42, %c0_43] : memref<8x1xf32, #tpu.memory_space<vmem>>, vector<8x1xf32>
    %52 = vector.broadcast %51 : vector<8x1xf32> to vector<8x256xf32>
    %53 = arith.addf %50, %52 : vector<8x256xf32>
    %cst_44 = arith.constant 0.000000e+00 : f32
    %54 = vector.broadcast %cst_44 : f32 to vector<8x256xf32>
    %55 = arith.maximumf %53, %54 : vector<8x256xf32>
    %56 = arith.truncf %55 : vector<8x256xf32> to vector<8x256xbf16>
    %c0_45 = arith.constant 0 : index
    %c0_46 = arith.constant 0 : index
    %57 = vector.load %arg6[%c0_45, %c0_46] : memref<32x8xbf16, #tpu.memory_space<vmem>>, vector<32x8xbf16>
    %cst_47 = arith.constant dense<0.000000e+00> : vector<32x256xf32>
    %58 = tpu.matmul %57, %56, %cst_47 {dimension_numbers = #tpu.dot_dimension_numbers<[1], [0], [0], [1], [0, 0, 1, 1], [], []>} : vector<32x8xbf16>, vector<8x256xbf16>, vector<32x256xf32> -> vector<32x256xf32>
    %c0_48 = arith.constant 0 : index
    %c0_49 = arith.constant 0 : index
    %59 = vector.load %arg7[%c0_48, %c0_49] : memref<32x1xf32, #tpu.memory_space<vmem>>, vector<32x1xf32>
    %60 = vector.broadcast %59 : vector<32x1xf32> to vector<32x256xf32>
    %61 = arith.addf %58, %60 : vector<32x256xf32>
    %c0_50 = arith.constant 0 : index
    %c0_51 = arith.constant 0 : index
    %c0_52 = arith.constant 0 : index
    %62 = vector.load %arg1[%c0_50, %c0_51, %c0_52] : memref<1x32x256xf32, #tpu.memory_space<vmem>>, vector<1x32x256xf32>
    %63 = vector.shape_cast %62 : vector<1x32x256xf32> to vector<32x256xf32>
    %64 = arith.addf %61, %63 : vector<32x256xf32>
    %cst_53 = arith.constant 0.000000e+00 : f32
    %65 = vector.broadcast %cst_53 : f32 to vector<32x256xf32>
    %66 = arith.maximumf %64, %65 : vector<32x256xf32>
    %c0_54 = arith.constant 0 : index
    %c0_55 = arith.constant 0 : index
    %c0_56 = arith.constant 0 : index
    %67 = vector.load %arg10[%c0_54, %c0_55, %c0_56] : memref<1x32x256xf32, #tpu.memory_space<vmem>>, vector<1x32x256xf32>
    %68 = vector.shape_cast %67 : vector<1x32x256xf32> to vector<32x256xf32>
    %69 = vector.shape_cast %66 : vector<32x256xf32> to vector<1x32x256xf32>
    tpu.vector_store %arg10[%c0_54, %c0_55, %c0_56], %69 {strides = array<i32>} : memref<1x32x256xf32, #tpu.memory_space<vmem>>, vector<1x32x256xf32>,
    return
  }
  func.func @transform_0(%arg0: i32) -> (i32, i32, i32) {
    %c0_i32 = arith.constant 0 : i32
    %c0_i32_0 = arith.constant 0 : i32
    %c0_i32_1 = arith.constant 0 : i32
    return %arg0, %c0_i32, %c0_i32_0 : i32, i32, i32
  }
  func.func @transform_1(%arg0: i32) -> (i32, i32) {
    %c0_i32 = arith.constant 0 : i32
    %c0_i32_0 = arith.constant 0 : i32
    %c0_i32_1 = arith.constant 0 : i32
    return %c0_i32, %c0_i32_0 : i32, i32
  }
  func.func @transform_2(%arg0: i32) -> (i32, i32) {
    %c0_i32 = arith.constant 0 : i32
    %c0_i32_0 = arith.constant 0 : i32
    %c0_i32_1 = arith.constant 0 : i32
    return %c0_i32, %c0_i32_0 : i32, i32
  }
  func.func @transform_3(%arg0: i32) -> (i32, i32) {
    %c0_i32 = arith.constant 0 : i32
    %c0_i32_0 = arith.constant 0 : i32
    %c0_i32_1 = arith.constant 0 : i32
    return %c0_i32, %c0_i32_0 : i32, i32
  }
  func.func @transform_4(%arg0: i32) -> (i32, i32) {
    %c0_i32 = arith.constant 0 : i32
    %c0_i32_0 = arith.constant 0 : i32
    %c0_i32_1 = arith.constant 0 : i32
    return %c0_i32, %c0_i32_0 : i32, i32
  }
  func.func @transform_5(%arg0: i32) -> (i32, i32) {
    %c0_i32 = arith.constant 0 : i32
    %c0_i32_0 = arith.constant 0 : i32
    %c0_i32_1 = arith.constant 0 : i32
    return %c0_i32, %c0_i32_0 : i32, i32
  }
  func.func @transform_6(%arg0: i32) -> (i32, i32) {
    %c0_i32 = arith.constant 0 : i32
    %c0_i32_0 = arith.constant 0 : i32
    %c0_i32_1 = arith.constant 0 : i32
    return %c0_i32, %c0_i32_0 : i32, i32
  }
  func.func @transform_7(%arg0: i32) -> (i32, i32) {
    %c0_i32 = arith.constant 0 : i32
    %c0_i32_0 = arith.constant 0 : i32
    %c0_i32_1 = arith.constant 0 : i32
    return %c0_i32, %c0_i32_0 : i32, i32
  }
  func.func @transform_8(%arg0: i32) -> (i32, i32) {
    %c0_i32 = arith.constant 0 : i32
    %c0_i32_0 = arith.constant 0 : i32
    %c0_i32_1 = arith.constant 0 : i32
    return %c0_i32, %c0_i32_0 : i32, i32
  }
  func.func @transform_9(%arg0: i32) -> (i32, i32, i32) {
    %c0_i32 = arith.constant 0 : i32
    %c0_i32_0 = arith.constant 0 : i32
    %c0_i32_1 = arith.constant 0 : i32
    return %arg0, %c0_i32, %c0_i32_0 : i32, i32, i32
  }
}

</mosaic_0001>

<llo_original>
// kernel: bottleneck_forward.1
$region0: #{bottleneck_forward.1}
  #allocation0 [shape = 'u32[]', space=smem, size = 0x4, offset = 0x4, fixed_abs, tag = 'smem constant byte address 0x4 - core index']
  #allocation1 [shape = 'u32[72,128]{1,0:T(1,128)}', space=vmem, size = 0x9000, scoped, tag = 'internal scratch']
  #allocation2 [shape = 'bf16[8,512]{1,0:T(8,128)(2,1)}', space=vmem, size = 0x2000, scoped, tag = 'scratch operand']
  #allocation3 [shape = 'bf16[72,256]{1,0:T(8,128)(2,1)}', space=vmem, size = 0x9000, scoped, tag = 'scratch operand']
  %s0 = inlined_call_operand.vmem [shape: f32[2,32,256], index: 0, kind: input, shape index: {}]
  %s1 = inlined_call_operand.vmem [shape: bf16[8,32], index: 1, kind: input, shape index: {}]
  %s2 = inlined_call_operand.vmem [shape: f32[8,1], index: 2, kind: input, shape index: {}]
  %s3 = inlined_call_operand.vmem [shape: bf16[8,72], index: 3, kind: input, shape index: {}]
  %s4 = inlined_call_operand.vmem [shape: f32[8,1], index: 4, kind: input, shape index: {}]
  %s5 = inlined_call_operand.vmem [shape: bf16[32,8], index: 5, kind: input, shape index: {}]
  %s6 = inlined_call_operand.vmem [shape: f32[32,1], index: 6, kind: input, shape index: {}]
  %s7 = inlined_call_operand.vmem [shape: bf16[1,256], index: 7, kind: input, shape index: {}]
  %s8 = inlined_call_operand.vmem [shape: bf16[1,256], index: 8, kind: input, shape index: {}]
  %s9 = inlined_call_operand.vmem [shape: f32[2,32,256], index: 9, kind: output, shape index: {}]
  %s10 = sld [smem:[#allocation0]]
  $region69: #{bottleneck_forward.1} parent=0
    _
  %s12 = ssub.s32 1, %s10
  %s13 = scalar_select 0, %s12, %s10
  loop: start=0, step=1, limit=4
  $region2: #{bottleneck_forward.1} parent=0 // loop_pre_header
    _
  $region3: #{bottleneck_forward.1} parent=0 // loop_header
    %s15 = sphi 0, %s19
    %p16 = scmp.ge.s32.totalorder %s15, 4
    %s25 = sphi 0, %s27
    %s28 = sphi 0, %s25
    %s29 = sphi 0, %s28
    %s45 = sphi 0, %s29
    %s49 = sphi 0, %s49
    %s51 = sphi 0, %s49
    %s52 = sphi 0, %s51
    %s66 = sphi 0, %s52
    %s70 = sphi 0, %s70
    %s72 = sphi 0, %s70
    %s73 = sphi 0, %s72
    %s87 = sphi 0, %s73
    %s91 = sphi 0, %s91
    %s93 = sphi 0, %s91
    %s94 = sphi 0, %s93
    %s108 = sphi 0, %s94
    %s112 = sphi 0, %s112
    %s114 = sphi 0, %s112
    %s115 = sphi 0, %s114
    %s129 = sphi 0, %s115
    %s133 = sphi 0, %s133
    %s135 = sphi 0, %s133
    %s136 = sphi 0, %s135
    %s150 = sphi 0, %s136
    %s154 = sphi 0, %s154
    %s156 = sphi 0, %s154
    %s157 = sphi 0, %s156
    %s171 = sphi 0, %s157
    %s175 = sphi 0, %s175
    %s177 = sphi 0, %s175
    %s178 = sphi 0, %s177
    %s192 = sphi 0, %s178
    %s196 = sphi 0, %s196
    %s198 = sphi 0, %s196
    %s199 = sphi 0, %s198
    %s213 = sphi 0, %s199
    %s219 = sphi 0, %s221
    %s222 = sphi 0, %s219
    %s223 = sphi 0, %s222
    %s239 = sphi 0, %s223
  $region4: #{bottleneck_forward.1} parent=0 // loop_header_branch
    %18 = sbr.rel (%p16) target = $region8
  $region5: #{bottleneck_forward.1} parent=0 // loop_body
    %s20 = ssub.s32 %s15, 1
    %s21 = ssub.s32 %s15, 2
    %s22 = sadd.s32 %s15, 1
    %s23 = ssub.s32 %s15, %s22
    %p24 = scmp.eq.s32.totalorder %s23, 0
    %s26 = sadd.s32 %s25, 1
    %s27 = scalar_select %p24, %s25, %s26
    %p30 = pneg %p24
    %p31 = scmp.eq.s32.totalorder %s15, 1
    %p32 = por %p30, %p31
    %p33 = scmp.ne.s32.totalorder %s25, %s28
    %p34 = scmp.eq.s32.totalorder %s15, 0
    %p35 = por %p33, %p34
    %p36 = scmp.ne.s32.totalorder %s25, %s28
    %p37 = scmp.eq.s32.totalorder %s20, 1
    %p38 = por %p36, %p37
    %p39 = scmp.ne.s32.totalorder %s28, %s29
    %p40 = scmp.eq.s32.totalorder %s20, 0
    %p41 = por %p39, %p40
    %p42 = scmp.ne.s32.totalorder %s28, %s29
    %p43 = scmp.eq.s32.totalorder %s21, 1
    %p44 = por %p42, %p43
    %p46 = scmp.ne.s32.totalorder %s29, %s45
    %p47 = scmp.eq.s32.totalorder %s21, 0
    %p48 = por %p46, %p47
    %s50 = sadd.s32 %s49, 1
    %p53 = scmp.eq.s32.totalorder %s15, 1
    %p54 = scmp.ne.s32.totalorder %s49, %s51
    %p55 = scmp.eq.s32.totalorder %s15, 0
    %p56 = por %p54, %p55
    %p57 = scmp.ne.s32.totalorder %s49, %s51
    %p58 = scmp.eq.s32.totalorder %s20, 1
    %p59 = por %p57, %p58
    %p60 = scmp.ne.s32.totalorder %s51, %s52
    %p61 = scmp.eq.s32.totalorder %s20, 0
    %p62 = por %p60, %p61
    %p63 = scmp.ne.s32.totalorder %s51, %s52
    %p64 = scmp.eq.s32.totalorder %s21, 1
    %p65 = por %p63, %p64
    %p67 = scmp.ne.s32.totalorder %s52, %s66
    %p68 = scmp.eq.s32.totalorder %s21, 0
    %p69 = por %p67, %p68
    %s71 = sadd.s32 %s70, 1
    %p74 = scmp.eq.s32.totalorder %s15, 1
    %p75 = scmp.ne.s32.totalorder %s70, %s72
    %p76 = scmp.eq.s32.totalorder %s15, 0
    %p77 = por %p75, %p76
    %p78 = scmp.ne.s32.totalorder %s70, %s72
    %p79 = scmp.eq.s32.totalorder %s20, 1
    %p80 = por %p78, %p79
    %p81 = scmp.ne.s32.totalorder %s72, %s73
    %p82 = scmp.eq.s32.totalorder %s20, 0
    %p83 = por %p81, %p82
    %p84 = scmp.ne.s32.totalorder %s72, %s73
    %p85 = scmp.eq.s32.totalorder %s21, 1
    %p86 = por %p84, %p85
    %p88 = scmp.ne.s32.totalorder %s73, %s87
    %p89 = scmp.eq.s32.totalorder %s21, 0
    %p90 = por %p88, %p89
    %s92 = sadd.s32 %s91, 1
    %p95 = scmp.eq.s32.totalorder %s15, 1
    %p96 = scmp.ne.s32.totalorder %s91, %s93
    %p97 = scmp.eq.s32.totalorder %s15, 0
    %p98 = por %p96, %p97
    %p99 = scmp.ne.s32.totalorder %s91, %s93
    %p100 = scmp.eq.s32.totalorder %s20, 1
    %p101 = por %p99, %p100
    %p102 = scmp.ne.s32.totalorder %s93, %s94
    %p103 = scmp.eq.s32.totalorder %s20, 0
    %p104 = por %p102, %p103
    %p105 = scmp.ne.s32.totalorder %s93, %s94
    %p106 = scmp.eq.s32.totalorder %s21, 1
    %p107 = por %p105, %p106
    %p109 = scmp.ne.s32.totalorder %s94, %s108
    %p110 = scmp.eq.s32.totalorder %s21, 0
    %p111 = por %p109, %p110
    %s113 = sadd.s32 %s112, 1
    %p116 = scmp.eq.s32.totalorder %s15, 1
    %p117 = scmp.ne.s32.totalorder %s112, %s114
    %p118 = scmp.eq.s32.totalorder %s15, 0
    %p119 = por %p117, %p118
    %p120 = scmp.ne.s32.totalorder %s112, %s114
    %p121 = scmp.eq.s32.totalorder %s20, 1
    %p122 = por %p120, %p121
    %p123 = scmp.ne.s32.totalorder %s114, %s115
    %p124 = scmp.eq.s32.totalorder %s20, 0
    %p125 = por %p123, %p124
    %p126 = scmp.ne.s32.totalorder %s114, %s115
    %p127 = scmp.eq.s32.totalorder %s21, 1
    %p128 = por %p126, %p127
    %p130 = scmp.ne.s32.totalorder %s115, %s129
    %p131 = scmp.eq.s32.totalorder %s21, 0
    %p132 = por %p130, %p131
    %s134 = sadd.s32 %s133, 1
    %p137 = scmp.eq.s32.totalorder %s15, 1
    %p138 = scmp.ne.s32.totalorder %s133, %s135
    %p139 = scmp.eq.s32.totalorder %s15, 0
    %p140 = por %p138, %p139
    %p141 = scmp.ne.s32.totalorder %s133, %s135
    %p142 = scmp.eq.s32.totalorder %s20, 1
    %p143 = por %p141, %p142
    %p144 = scmp.ne.s32.totalorder %s135, %s136
    %p145 = scmp.eq.s32.totalorder %s20, 0
    %p146 = por %p144, %p145
    %p147 = scmp.ne.s32.totalorder %s135, %s136
    %p148 = scmp.eq.s32.totalorder %s21, 1
    %p149 = por %p147, %p148
    %p151 = scmp.ne.s32.totalorder %s136, %s150
    %p152 = scmp.eq.s32.totalorder %s21, 0
    %p153 = por %p151, %p152
    %s155 = sadd.s32 %s154, 1
    %p158 = scmp.eq.s32.totalorder %s15, 1
    %p159 = scmp.ne.s32.totalorder %s154, %s156
    %p160 = scmp.eq.s32.totalorder %s15, 0
    %p161 = por %p159, %p160
    %p162 = scmp.ne.s32.totalorder %s154, %s156
    %p163 = scmp.eq.s32.totalorder %s20, 1
    %p164 = por %p162, %p163
    %p165 = scmp.ne.s32.totalorder %s156, %s157
    %p166 = scmp.eq.s32.totalorder %s20, 0
    %p167 = por %p165, %p166
    %p168 = scmp.ne.s32.totalorder %s156, %s157
    %p169 = scmp.eq.s32.totalorder %s21, 1
    %p170 = por %p168, %p169
    %p172 = scmp.ne.s32.totalorder %s157, %s171
    %p173 = scmp.eq.s32.totalorder %s21, 0
    %p174 = por %p172, %p173
    %s176 = sadd.s32 %s175, 1
    %p179 = scmp.eq.s32.totalorder %s15, 1
    %p180 = scmp.ne.s32.totalorder %s175, %s177
    %p181 = scmp.eq.s32.totalorder %s15, 0
    %p182 = por %p180, %p181
    %p183 = scmp.ne.s32.totalorder %s175, %s177
    %p184 = scmp.eq.s32.totalorder %s20, 1
    %p185 = por %p183, %p184
    %p186 = scmp.ne.s32.totalorder %s177, %s178
    %p187 = scmp.eq.s32.totalorder %s20, 0
    %p188 = por %p186, %p187
    %p189 = scmp.ne.s32.totalorder %s177, %s178
    %p190 = scmp.eq.s32.totalorder %s21, 1
    %p191 = por %p189, %p190
    %p193 = scmp.ne.s32.totalorder %s178, %s192
    %p194 = scmp.eq.s32.totalorder %s21, 0
    %p195 = por %p193, %p194
    %s197 = sadd.s32 %s196, 1
    %p200 = scmp.eq.s32.totalorder %s15, 1
    %p201 = scmp.ne.s32.totalorder %s196, %s198
    %p202 = scmp.eq.s32.totalorder %s15, 0
    %p203 = por %p201, %p202
    %p204 = scmp.ne.s32.totalorder %s196, %s198
    %p205 = scmp.eq.s32.totalorder %s20, 1
    %p206 = por %p204, %p205
    %p207 = scmp.ne.s32.totalorder %s198, %s199
    %p208 = scmp.eq.s32.totalorder %s20, 0
    %p209 = por %p207, %p208
    %p210 = scmp.ne.s32.totalorder %s198, %s199
    %p211 = scmp.eq.s32.totalorder %s21, 1
    %p212 = por %p210, %p211
    %p214 = scmp.ne.s32.totalorder %s199, %s213
    %p215 = scmp.eq.s32.totalorder %s21, 0
    %p216 = por %p214, %p215
    %s217 = ssub.s32 %s15, %s22
    %p218 = scmp.eq.s32.totalorder %s217, 0
    %s220 = sadd.s32 %s219, 1
    %s221 = scalar_select %p218, %s219, %s220
    %p224 = pneg %p218
    %p225 = scmp.eq.s32.totalorder %s15, 1
    %p226 = por %p224, %p225
    %p227 = scmp.ne.s32.totalorder %s219, %s222
    %p228 = scmp.eq.s32.totalorder %s15, 0
    %p229 = por %p227, %p228
    %p230 = scmp.ne.s32.totalorder %s219, %s222
    %p231 = scmp.eq.s32.totalorder %s20, 1
    %p232 = por %p230, %p231
    %p233 = scmp.ne.s32.totalorder %s222, %s223
    %p234 = scmp.eq.s32.totalorder %s20, 0
    %p235 = por %p233, %p234
    %p236 = scmp.ne.s32.totalorder %s222, %s223
    %p237 = scmp.eq.s32.totalorder %s21, 1
    %p238 = por %p236, %p237
    %p240 = scmp.ne.s32.totalorder %s223, %s239
    %p241 = scmp.eq.s32.totalorder %s21, 0
    %p242 = por %p240, %p241
    %p243 = scmp.le.s32.totalorder 1, %s15
    %p244 = scmp.lt.s32.totalorder %s15, 3
    %p245 = pnand %p243, %p244
    %p246 = pneg %p245
    // Predicated region
    $region9: #{bottleneck_forward.1} parent=5 // pred_check
      _
    $region10: #{bottleneck_forward.1} parent=5 // pred_check_branch
      %248 = sbr.rel (%p245) target = $region12
    $region11: #{bottleneck_forward.1} parent=5 // pred_region
      %s249 = ssub.s32 %s15, 1
      // Predicated region
      $region13: #{bottleneck_forward.1} parent=11 // pred_check
        %p250 = pneg %p62
      $region14: #{bottleneck_forward.1} parent=11 // pred_check_branch
        %252 = sbr.rel (%p250) target = $region16
      $region15: #{bottleneck_forward.1} parent=11 // pred_region
        _
      $region16: #{bottleneck_forward.1} parent=11 // pred_fallthru
        _
      // Predicated region
      $region17: #{bottleneck_forward.1} parent=11 // pred_check
        %p253 = pneg %p83
      $region18: #{bottleneck_forward.1} parent=11 // pred_check_branch
        %255 = sbr.rel (%p253) target = $region20
      $region19: #{bottleneck_forward.1} parent=11 // pred_region
        _
      $region20: #{bottleneck_forward.1} parent=11 // pred_fallthru
        _
      // Predicated region
      $region21: #{bottleneck_forward.1} parent=11 // pred_check
        %p256 = pneg %p104
      $region22: #{bottleneck_forward.1} parent=11 // pred_check_branch
        %258 = sbr.rel (%p256) target = $region24
      $region23: #{bottleneck_forward.1} parent=11 // pred_region
        _
      $region24: #{bottleneck_forward.1} parent=11 // pred_fallthru
        _
      // Predicated region
      $region25: #{bottleneck_forward.1} parent=11 // pred_check
        %p259 = pneg %p125
      $region26: #{bottleneck_forward.1} parent=11 // pred_check_branch
        %261 = sbr.rel (%p259) target = $region28
      $region27: #{bottleneck_forward.1} parent=11 // pred_region
        _
      $region28: #{bottleneck_forward.1} parent=11 // pred_fallthru
        _
      // Predicated region
      $region29: #{bottleneck_forward.1} parent=11 // pred_check
        %p262 = pneg %p146
      $region30: #{bottleneck_forward.1} parent=11 // pred_check_branch
        %264 = sbr.rel (%p262) target = $region32
      $region31: #{bottleneck_forward.1} parent=11 // pred_region
        _
      $region32: #{bottleneck_forward.1} parent=11 // pred_fallthru
        _
      // Predicated region
      $region33: #{bottleneck_forward.1} parent=11 // pred_check
        %p265 = pneg %p167
      $region34: #{bottleneck_forward.1} parent=11 // pred_check_branch
        %267 = sbr.rel (%p265) target = $region36
      $region35: #{bottleneck_forward.1} parent=11 // pred_region
        _
      $region36: #{bottleneck_forward.1} parent=11 // pred_fallthru
        _
      // Predicated region
      $region37: #{bottleneck_forward.1} parent=11 // pred_check
        %p268 = pneg %p188
      $region38: #{bottleneck_forward.1} parent=11 // pred_check_branch
        %270 = sbr.rel (%p268) target = $region40
      $region39: #{bottleneck_forward.1} parent=11 // pred_region
        _
      $region40: #{bottleneck_forward.1} parent=11 // pred_fallthru
        _
      // Predicated region
      $region41: #{bottleneck_forward.1} parent=11 // pred_check
        %p271 = pneg %p209
      $region42: #{bottleneck_forward.1} parent=11 // pred_check_branch
        %273 = sbr.rel (%p271) target = $region44
      $region43: #{bottleneck_forward.1} parent=11 // pred_region
        _
      $region44: #{bottleneck_forward.1} parent=11 // pred_fallthru
        _
    $region12: #{bottleneck_forward.1} parent=5 // pred_fallthru
      _
    %p274 = scmp.lt.s32.totalorder %s15, 2
    // Predicated region
    $region45: #{bottleneck_forward.1} parent=5 // pred_check
      %p275 = pneg %p274
    $region46: #{bottleneck_forward.1} parent=5 // pred_check_branch
      %277 = sbr.rel (%p275) target = $region48
    $region47: #{bottleneck_forward.1} parent=5 // pred_region
      // Predicated region
      $region49: #{bottleneck_forward.1} parent=47 // pred_check
        %p278 = pneg %p35
      $region50: #{bottleneck_forward.1} parent=47 // pred_check_branch
        %280 = sbr.rel (%p278) target = $region52
      $region51: #{bottleneck_forward.1} parent=47 // pred_region
        %p281 = scmp.lt.s32.totalorder %s15, 1
        %s282 = scalar_select %p281, %s15, 1
        %s283 = smul.addr %s282, 8
        %s284 = smul.addr %s283, 8
        %s285 = scalar_lea.vmem %s0, %s284
      $region52: #{bottleneck_forward.1} parent=47 // pred_fallthru
        _
    $region48: #{bottleneck_forward.1} parent=5 // pred_fallthru
      _
    %p286 = scmp.le.s32.totalorder 1, %s15
    %p287 = scmp.lt.s32.totalorder %s15, 3
    %p288 = pnand %p286, %p287
    %p289 = pneg %p288
    // Predicated region
    $region53: #{bottleneck_forward.1} parent=5 // pred_check
      _
    $region54: #{bottleneck_forward.1} parent=5 // pred_check_branch
      %291 = sbr.rel (%p288) target = $region56
    $region55: #{bottleneck_forward.1} parent=5 // pred_region
      %s292 = ssub.s32 %s15, 1
      %p293 = scmp.lt.s32.totalorder %s20, 1
      %s294 = scalar_select %p293, %s20, 1
      %s295 = smul.addr %s294, 8
      %s296 = smul.addr %s295, 8
      %s297 = scalar_lea.vmem %s0, %s296
      %p298 = pneg %p41
      %p299 = pneg %p38
      %p300 = pneg %p62
      %p301 = pneg %p59
      %p302 = pneg %p83
      %p303 = pneg %p80
      %p304 = pneg %p104
      %p305 = pneg %p101
      %p306 = pneg %p125
      %p307 = pneg %p122
      %p308 = pneg %p146
      %p309 = pneg %p143
      %p310 = pneg %p167
      %p311 = pneg %p164
      %p312 = pneg %p188
      %p313 = pneg %p185
      %p314 = pneg %p209
      %p315 = pneg %p206
      %p316 = pneg %p235
      %p317 = pneg %p232
      %p318 = scmp.lt.s32.totalorder %s20, 1
      %s319 = scalar_select %p318, %s20, 1
      %s320 = smul.addr %s319, 8
      %s321 = smul.addr %s320, 8
      %s322 = scalar_lea.vmem %s9, %s321
      %p323 = scmp.lt.s32.totalorder %s20, 1
      %s324 = scalar_select %p323, %s20, 1
      %s325 = smul.addr %s324, 8
      %s326 = smul.addr %s325, 8
      %s327 = scalar_lea.vmem %s0, %s326
      %p328 = scmp.lt.s32.totalorder %s20, 1
      %s329 = scalar_select %p328, %s20, 1
      %s330 = smul.addr %s329, 8
      %s331 = smul.addr %s330, 8
      %s332 = scalar_lea.vmem %s9, %s331
      %v334 = vld [vmem:[%s1] sm:$0xf]
      %v335 = vld [vmem:[%s327] sm:$0xff]
      %v336 = vld [vmem:[%s327 + $0x8] sm:$0xff]
      %v337 = vld [vmem:[%s327 + $0x10] sm:$0xff]
      %v338 = vld [vmem:[%s327 + $0x18] sm:$0xff]
      %v339 = vld [vmem:[%s327 + $0x20] sm:$0xff]
      %v340 = vld [vmem:[%s327 + $0x28] sm:$0xff]
      %v341 = vld [vmem:[%s327 + $0x30] sm:$0xff]
      %v342 = vld [vmem:[%s327 + $0x38] sm:$0xff]
      %v343 = vpack.c.bf16 %v337, %v335
      %v344 = vpack.c.bf16 %v338, %v336
      %v345 = vpack.c.bf16 %v341, %v339
      %v346 = vpack.c.bf16 %v342, %v340
      %v347 = vld [vmem:[%s2] sm:$0xff]
      %349 = vset.pattern.permute.xlu0 0
      %350 = vperm.xlu0 %349, %v347
      %v351 = vpop.permute.xlu0 %350
      %vm353 = vcmask 261120
      %v355 = vsel %vm353, %v334, 0
      %357 = vmatpush.bf16.msra.mxu0 0
      %358 = vmatpush.bf16.msra.mxu0 0
      %359 = vmatpush.bf16.msra.mxu0 0
      %360 = vmatpush.bf16.msra.mxu0 0
      %361 = vmatpush.bf16.msra.mxu0 0
      %362 = vmatpush.bf16.msra.mxu0 0
      %363 = vmatpush.bf16.msra.mxu0 %v345
      %364 = vmatpush.bf16.msra.mxu0 %v343
      %365 = vmatmul.bf16.gmra.mxu0 %v355
      %v366 = vpop.f32.mrf.mxu0
      %v367 = vadd.f32 %v351, %v366
      %v368 = vpop.f32.mrf.mxu0
      %369 = vdwg.mxu0
      %370 = vmatpush.bf16.msra.mxu0 0
      %371 = vmatpush.bf16.msra.mxu0 0
      %372 = vmatpush.bf16.msra.mxu0 0
      %373 = vmatpush.bf16.msra.mxu0 0
      %374 = vmatpush.bf16.msra.mxu0 0
      %375 = vmatpush.bf16.msra.mxu0 0
      %376 = vmatpush.bf16.msra.mxu0 %v346
      %377 = vmatpush.bf16.msra.mxu0 %v344
      %378 = vmatmul.bf16.gmra.mxu0 %v355
      %v379 = vpop.f32.mrf.mxu0
      %v380 = vadd.f32 %v351, %v379
      %v381 = vpop.f32.mrf.mxu0
      %382 = vdwg.mxu0
      %v383 = vmax.f32 %v367, 0.0
      %v384 = vmax.f32 %v380, 0.0
      %v385 = vpack.c.bf16 %v384, %v383
      %386 = vst [vmem:[#allocation2] sm:$0xf] 0
      %387 = vst [vmem:[#allocation2 + $0xc] sm:$0xf] 0
      %388 = vst [vmem:[#allocation2 + $0x4] sm:$0xff] %v385
      %v389 = vld [vmem:[%s7] sm:$0x3]
      %v390 = vld [vmem:[%s8] sm:$0x3]
      %v391 = vld [vmem:[#allocation2] sm:$0xff]
      %v392 = vld [vmem:[#allocation2 + $0x8] sm:$0xf]
      %394 = vst [vmem:[#allocation1] ss:$9 sm:$0xff] %v389
      %v395 = vld [vmem:[#allocation1] sm:$0xff]
      %v396 = vld [vmem:[#allocation1 + $0x9] sm:$0xff]
      %v397 = vpack.i.b16 %v395, %v395
      %v399 = vperm.slane %v397, 0
      %v400 = vpack.i.b16 %v396, %v396
      %v402 = vperm.slane %v400, 0
      %v403 = vunpack.c.l.bf16 %v391
      %v404 = vunpack.c.h.bf16 %v391
      %v405 = vunpack.c.l.bf16 %v392
      %v406 = vunpack.c.l.bf16 %v399
      %v407 = vunpack.c.l.bf16 %v402
      %410 = vrot.lane.b32.xlu0 %v406, 111
      %v411 = vpop.permute.xlu0 %410
      %412 = vrot.lane.b32.xlu0 %v407, 111
      %v413 = vpop.permute.xlu0 %412
      %vm414 = vcmask 908288
      %v415 = vsel %vm414, %v411, %v413
      %v419 = vmul.f32 %v403, %v411
      %v420 = vmul.f32 %v404, %v415
      %v421 = vmul.f32 %v405, %v413
      %v422 = vpack.c.bf16 %v420, %v419
      %v423 = vpack.c.bf16 %v421, %v421
      %426 = vrot.lane.b32.xlu0 %v422, 17
      %v427 = vpop.permute.xlu0 %426
      %428 = vrot.lane.b32.xlu0 %v423, 17
      %v429 = vpop.permute.xlu0 %428
      %v430 = vrot.slane %v427, 4
      %v431 = vrot.slane %v429, 4
      %vm432 = vcmask 1043456
      %v433 = vsel %vm432, %v430, %v431
      %vm434 = vcmask 138240
      %v435 = vsel %vm434, %v427, %v433
      %437 = vst [vmem:[#allocation3] sm:$0xff] %v435
      %v438 = vld [vmem:[#allocation2] sm:$0xff]
      %v439 = vld [vmem:[#allocation2 + $0x8] sm:$0xf]
      %442 = vrot.lane.b32.xlu0 %v438, 16
      %v443 = vpop.permute.xlu0 %442
      %444 = vrot.lane.b32.xlu0 %v439, 16
      %v445 = vpop.permute.xlu0 %444
      %v446 = vrot.slane %v443, 4
      %v447 = vrot.slane %v445, 4
      %v448 = vsel %vm432, %v446, %v447
      %vm449 = vcmask 130048
      %v450 = vsel %vm449, %v443, %v448
      %452 = vst [vmem:[#allocation3 + $0x8] sm:$0xff] %v450
      %v453 = vld [vmem:[#allocation2] sm:$0xff]
      %v454 = vld [vmem:[#allocation2 + $0x8] sm:$0xf]
      %456 = vst [vmem:[#allocation1] ss:$9 sm:$0xff] %v390
      %v457 = vld [vmem:[#allocation1] sm:$0xff]
      %v458 = vld [vmem:[#allocation1 + $0x9] sm:$0xff]
      %v459 = vpack.i.b16 %v457, %v457
      %v461 = vperm.slane %v459, 0
      %v462 = vpack.i.b16 %v458, %v458
      %v464 = vperm.slane %v462, 0
      %v465 = vunpack.c.l.bf16 %v453
      %v466 = vunpack.c.h.bf16 %v453
      %v467 = vunpack.c.l.bf16 %v454
      %v468 = vunpack.c.l.bf16 %v461
      %v469 = vunpack.c.l.bf16 %v464
      %472 = vrot.lane.b32.xlu0 %v468, 113
      %v473 = vpop.permute.xlu0 %472
      %474 = vrot.lane.b32.xlu0 %v469, 113
      %v475 = vpop.permute.xlu0 %474
      %vm476 = vcmask 924672
      %v477 = vsel %vm476, %v473, %v475
      %v481 = vmul.f32 %v465, %v473
      %v482 = vmul.f32 %v466, %v477
      %v483 = vmul.f32 %v467, %v475
      %v484 = vpack.c.bf16 %v482, %v481
      %v485 = vpack.c.bf16 %v483, %v483
      %488 = vrot.lane.b32.xlu0 %v484, 15
      %v489 = vpop.permute.xlu0 %488
      %490 = vrot.lane.b32.xlu0 %v485, 15
      %v491 = vpop.permute.xlu0 %490
      %v492 = vrot.slane %v489, 4
      %v493 = vrot.slane %v491, 4
      %v494 = vsel %vm432, %v492, %v493
      %vm495 = vcmask 121856
      %v496 = vsel %vm495, %v489, %v494
      %498 = vst [vmem:[#allocation3 + $0x10] sm:$0xff] %v496
      %v499 = vld [vmem:[#allocation2] sm:$0xff]
      %v500 = vld [vmem:[#allocation2 + $0x8] sm:$0xf]
      %v501 = vunpack.c.l.bf16 %v499
      %v502 = vunpack.c.h.bf16 %v499
      %v503 = vunpack.c.l.bf16 %v500
      %504 = vrot.lane.b32.xlu0 %v406, 127
      %v505 = vpop.permute.xlu0 %504
      %506 = vrot.lane.b32.xlu0 %v407, 127
      %v507 = vpop.permute.xlu0 %506
      %vm508 = vcmask 1039360
      %v509 = vsel %vm508, %v505, %v507
      %v513 = vmul.f32 %v501, %v505
      %v514 = vmul.f32 %v502, %v509
      %v515 = vmul.f32 %v503, %v507
      %v516 = vpack.c.bf16 %v514, %v513
      %v517 = vpack.c.bf16 %v515, %v515
      %520 = vrot.lane.b32.xlu0 %v516, 1
      %v521 = vpop.permute.xlu0 %520
      %522 = vrot.lane.b32.xlu0 %v517, 1
      %v523 = vpop.permute.xlu0 %522
      %v524 = vrot.slane %v521, 4
      %v525 = vrot.slane %v523, 4
      %v526 = vsel %vm432, %v524, %v525
      %vm527 = vcmask 7168
      %v528 = vsel %vm527, %v521, %v526
      %530 = vst [vmem:[#allocation3 + $0x18] sm:$0xff] %v528
      %v531 = vld [vmem:[#allocation2 + $0x4] sm:$0xff]
      %532 = vst [vmem:[#allocation3 + $0x20] sm:$0xff] %v531
      %v533 = vld [vmem:[#allocation2 + $0x4] sm:$0xff]
      %v534 = vld [vmem:[#allocation2 + $0xc] sm:$0xf]
      %v535 = vunpack.c.l.bf16 %v533
      %v536 = vunpack.c.h.bf16 %v533
      %v537 = vunpack.c.l.bf16 %v534
      %538 = vrot.lane.b32.xlu0 %v468, 1
      %v539 = vpop.permute.xlu0 %538
      %540 = vrot.lane.b32.xlu0 %v469, 1
      %v541 = vpop.permute.xlu0 %540
      %vm542 = vcmask 7168
      %v543 = vsel %vm542, %v539, %v541
      %v547 = vmul.f32 %v535, %v539
      %v548 = vmul.f32 %v536, %v543
      %v549 = vmul.f32 %v537, %v541
      %v550 = vpack.c.bf16 %v548, %v547
      %v551 = vpack.c.bf16 %v549, %v549
      %554 = vrot.lane.b32.xlu0 %v550, 127
      %v555 = vpop.permute.xlu0 %554
      %556 = vrot.lane.b32.xlu0 %v551, 127
      %v557 = vpop.permute.xlu0 %556
      %v558 = vrot.slane %v555, 4
      %v559 = vrot.slane %v557, 4
      %v560 = vsel %vm432, %v558, %v559
      %vm561 = vcmask 1039360
      %v562 = vsel %vm561, %v555, %v560
      %564 = vst [vmem:[#allocation3 + $0x28] sm:$0xff] %v562
      %v565 = vld [vmem:[#allocation2 + $0x4] sm:$0xff]
      %v566 = vld [vmem:[#allocation2 + $0xc] sm:$0xf]
      %v567 = vunpack.c.l.bf16 %v565
      %v568 = vunpack.c.h.bf16 %v565
      %v569 = vunpack.c.l.bf16 %v566
      %570 = vrot.lane.b32.xlu0 %v406, 15
      %v571 = vpop.permute.xlu0 %570
      %572 = vrot.lane.b32.xlu0 %v407, 15
      %v573 = vpop.permute.xlu0 %572
      %vm574 = vcmask 121856
      %v575 = vsel %vm574, %v571, %v573
      %v579 = vmul.f32 %v567, %v571
      %v580 = vmul.f32 %v568, %v575
      %v581 = vmul.f32 %v569, %v573
      %v582 = vpack.c.bf16 %v580, %v579
      %v583 = vpack.c.bf16 %v581, %v581
      %586 = vrot.lane.b32.xlu0 %v582, 113
      %v587 = vpop.permute.xlu0 %586
      %588 = vrot.lane.b32.xlu0 %v583, 113
      %v589 = vpop.permute.xlu0 %588
      %v590 = vrot.slane %v587, 4
      %v591 = vrot.slane %v589, 4
      %v592 = vsel %vm432, %v590, %v591
      %vm593 = vcmask 924672
      %v594 = vsel %vm593, %v587, %v592
      %596 = vst [vmem:[#allocation3 + $0x30] sm:$0xff] %v594
      %v597 = vld [vmem:[#allocation2 + $0x4] sm:$0xff]
      %v598 = vld [vmem:[#allocation2 + $0xc] sm:$0xf]
      %601 = vrot.lane.b32.xlu0 %v597, 112
      %v602 = vpop.permute.xlu0 %601
      %603 = vrot.lane.b32.xlu0 %v598, 112
      %v604 = vpop.permute.xlu0 %603
      %v605 = vrot.slane %v602, 4
      %v606 = vrot.slane %v604, 4
      %v607 = vsel %vm432, %v605, %v606
      %vm608 = vcmask 916480
      %v609 = vsel %vm608, %v602, %v607
      %611 = vst [vmem:[#allocation3 + $0x38] sm:$0xff] %v609
      %v612 = vld [vmem:[#allocation2 + $0x4] sm:$0xff]
      %v613 = vld [vmem:[#allocation2 + $0xc] sm:$0xf]
      %v614 = vunpack.c.l.bf16 %v612
      %v615 = vunpack.c.h.bf16 %v612
      %v616 = vunpack.c.l.bf16 %v613
      %617 = vrot.lane.b32.xlu0 %v468, 17
      %v618 = vpop.permute.xlu0 %617
      %619 = vrot.lane.b32.xlu0 %v469, 17
      %v620 = vpop.permute.xlu0 %619
      %vm621 = vcmask 138240
      %v622 = vsel %vm621, %v618, %v620
      %v626 = vmul.f32 %v614, %v618
      %v627 = vmul.f32 %v615, %v622
      %v628 = vmul.f32 %v616, %v620
      %v629 = vpack.c.bf16 %v627, %v626
      %v630 = vpack.c.bf16 %v628, %v628
      %633 = vrot.lane.b32.xlu0 %v629, 111
      %v634 = vpop.permute.xlu0 %633
      %635 = vrot.lane.b32.xlu0 %v630, 111
      %v636 = vpop.permute.xlu0 %635
      %v637 = vrot.slane %v634, 4
      %v638 = vrot.slane %v636, 4
      %v639 = vsel %vm432, %v637, %v638
      %vm640 = vcmask 908288
      %v641 = vsel %vm640, %v634, %v639
      %643 = vst [vmem:[#allocation3 + $0x40] sm:$0xff] %v641
      %v644 = vld [vmem:[%s3] sm:$0xf]
      %v645 = vld [vmem:[#allocation3] sm:$0xff]
      %v646 = vld [vmem:[#allocation3 + $0x8] sm:$0xff]
      %v647 = vld [vmem:[#allocation3 + $0x10] sm:$0xff]
      %v648 = vld [vmem:[#allocation3 + $0x18] sm:$0xff]
      %v649 = vld [vmem:[#allocation3 + $0x20] sm:$0xff]
      %v650 = vld [vmem:[#allocation3 + $0x28] sm:$0xff]
      %v651 = vld [vmem:[#allocation3 + $0x30] sm:$0xff]
      %v652 = vld [vmem:[#allocation3 + $0x38] sm:$0xff]
      %v653 = vld [vmem:[#allocation3 + $0x40] sm:$0xff]
      %v654 = vld [vmem:[%s4] sm:$0xff]
      %656 = vset.pattern.permute.xlu0 0
      %657 = vperm.xlu0 %656, %v654
      %v658 = vpop.permute.xlu0 %657
      %v669 = vunpack.c.l.b16 %v645
      %v670 = vunpack.c.h.b16 %v645
      %v671 = vunpack.c.l.b16 %v646
      %v672 = vunpack.c.h.b16 %v646
      %v673 = vunpack.c.l.b16 %v647
      %v674 = vunpack.c.h.b16 %v647
      %v675 = vunpack.c.l.b16 %v648
      %v676 = vunpack.c.h.b16 %v648
      %v677 = vunpack.c.l.b16 %v649
      %v678 = vunpack.c.h.b16 %v649
      %v679 = vunpack.c.l.b16 %v650
      %v680 = vunpack.c.h.b16 %v650
      %v681 = vunpack.c.l.b16 %v651
      %v682 = vunpack.c.h.b16 %v651
      %v683 = vunpack.c.l.b16 %v652
      %v684 = vunpack.c.h.b16 %v652
      %v685 = vunpack.c.l.b16 %v653
      %v686 = vunpack.c.h.b16 %v653
      %v687 = vpack.c.b16 %v671, %v669
      %v688 = vpack.c.b16 %v672, %v670
      %v689 = vpack.c.b16 %v675, %v673
      %v690 = vpack.c.b16 %v676, %v674
      %v691 = vpack.c.b16 %v679, %v677
      %v692 = vpack.c.b16 %v680, %v678
      %v693 = vpack.c.b16 %v683, %v681
      %v694 = vpack.c.b16 %v684, %v682
      %v695 = vpack.c.b16 %v685, %v685
      %v696 = vpack.c.b16 %v686, %v686
      %vm705 = vcmask 588800
      %v707 = vsel %vm705, %v644, 0
      %vm709 = vcmask 1043456
      %v711 = vsel %vm709, %v695, 0
      %v714 = vsel %vm709, %v696, 0
      %716 = vmatpush.bf16.msra.mxu0 0
      %717 = vmatpush.bf16.msra.mxu0 0
      %718 = vmatpush.bf16.msra.mxu0 0
      %719 = vmatpush.bf16.msra.mxu0 %v711
      %720 = vmatpush.bf16.msra.mxu0 %v693
      %721 = vmatpush.bf16.msra.mxu0 %v691
      %722 = vmatpush.bf16.msra.mxu0 %v689
      %723 = vmatpush.bf16.msra.mxu0 %v687
      %724 = vmatmul.bf16.gmra.mxu0 %v707
      %v725 = vpop.f32.mrf.mxu0
      %v726 = vadd.f32 %v658, %v725
      %v727 = vpop.f32.mrf.mxu0
      %728 = vdwg.mxu0
      %729 = vmatpush.bf16.msra.mxu0 0
      %730 = vmatpush.bf16.msra.mxu0 0
      %731 = vmatpush.bf16.msra.mxu0 0
      %732 = vmatpush.bf16.msra.mxu0 %v714
      %733 = vmatpush.bf16.msra.mxu0 %v694
      %734 = vmatpush.bf16.msra.mxu0 %v692
      %735 = vmatpush.bf16.msra.mxu0 %v690
      %736 = vmatpush.bf16.msra.mxu0 %v688
      %737 = vmatmul.bf16.gmra.mxu0 %v707
      %v738 = vpop.f32.mrf.mxu0
      %v739 = vadd.f32 %v658, %v738
      %v740 = vpop.f32.mrf.mxu0
      %741 = vdwg.mxu0
      %v742 = vmax.f32 %v726, 0.0
      %v743 = vmax.f32 %v739, 0.0
      %v744 = vpack.c.bf16 %v742, %v742
      %v745 = vpack.c.bf16 %v743, %v743
      %v746 = vld [vmem:[%s5] sm:$0xf]
      %v747 = vld [vmem:[%s5 + $0x4] sm:$0xf]
      %v748 = vld [vmem:[%s5 + $0x8] sm:$0xf]
      %v749 = vld [vmem:[%s5 + $0xc] sm:$0xf]
      %v750 = vld [vmem:[%s6] sm:$0xff]
      %v751 = vld [vmem:[%s6 + $0x8] sm:$0xff]
      %v752 = vld [vmem:[%s6 + $0x10] sm:$0xff]
      %v753 = vld [vmem:[%s6 + $0x18] sm:$0xff]
      %755 = vset.pattern.permute.xlu0 0
      %756 = vperm.xlu0 %755, %v750
      %v757 = vpop.permute.xlu0 %756
      %760 = vset.pattern.permute.xlu0 0
      %761 = vperm.xlu0 %760, %v751
      %v762 = vpop.permute.xlu0 %761
      %765 = vset.pattern.permute.xlu0 0
      %766 = vperm.xlu0 %765, %v752
      %v767 = vpop.permute.xlu0 %766
      %770 = vset.pattern.permute.xlu0 0
      %771 = vperm.xlu0 %770, %v753
      %v772 = vpop.permute.xlu0 %771
      %v778 = vunpack.c.l.b16 %v746
      %v779 = vunpack.c.l.b16 %v747
      %v780 = vunpack.c.l.b16 %v748
      %v781 = vunpack.c.l.b16 %v749
      %v782 = vpack.c.b16 %v779, %v778
      %v783 = vpack.c.b16 %v781, %v780
      %vm784 = vcmask 64512
      %v786 = vsel %vm784, %v782, 0
      %v789 = vsel %vm784, %v783, 0
      %v792 = vsel %vm709, %v744, 0
      %v795 = vsel %vm709, %v745, 0
      %797 = vmatpush.bf16.msra.mxu0 0
      %798 = vmatpush.bf16.msra.mxu0 0
      %799 = vmatpush.bf16.msra.mxu0 0
      %800 = vmatpush.bf16.msra.mxu0 0
      %801 = vmatpush.bf16.msra.mxu0 0
      %802 = vmatpush.bf16.msra.mxu0 0
      %803 = vmatpush.bf16.msra.mxu0 0
      %804 = vmatpush.bf16.msra.mxu0 %v792
      %805 = vmatmul.bf16.gmra.mxu0 %v786
      %v806 = vpop.f32.mrf.mxu0
      %v807 = vadd.f32 %v757, %v806
      %v808 = vpop.f32.mrf.mxu0
      %v809 = vadd.f32 %v762, %v808
      %810 = vmatmul.bf16.gmra.mxu0 %v789
      %v811 = vpop.f32.mrf.mxu0
      %v812 = vadd.f32 %v767, %v811
      %v813 = vpop.f32.mrf.mxu0
      %v814 = vadd.f32 %v772, %v813
      %815 = vdwg.mxu0
      %816 = vmatpush.bf16.msra.mxu0 0
      %817 = vmatpush.bf16.msra.mxu0 0
      %818 = vmatpush.bf16.msra.mxu0 0
      %819 = vmatpush.bf16.msra.mxu0 0
      %820 = vmatpush.bf16.msra.mxu0 0
      %821 = vmatpush.bf16.msra.mxu0 0
      %822 = vmatpush.bf16.msra.mxu0 0
      %823 = vmatpush.bf16.msra.mxu0 %v795
      %824 = vmatmul.bf16.gmra.mxu0 %v786
      %v825 = vpop.f32.mrf.mxu0
      %v826 = vadd.f32 %v757, %v825
      %v827 = vpop.f32.mrf.mxu0
      %v828 = vadd.f32 %v762, %v827
      %829 = vmatmul.bf16.gmra.mxu0 %v789
      %v830 = vpop.f32.mrf.mxu0
      %v831 = vadd.f32 %v767, %v830
      %v832 = vpop.f32.mrf.mxu0
      %v833 = vadd.f32 %v772, %v832
      %834 = vdwg.mxu0
      %v835 = vld [vmem:[%s327] sm:$0xff]
      %v836 = vld [vmem:[%s327 + $0x8] sm:$0xff]
      %v837 = vld [vmem:[%s327 + $0x10] sm:$0xff]
      %v838 = vld [vmem:[%s327 + $0x18] sm:$0xff]
      %v839 = vld [vmem:[%s327 + $0x20] sm:$0xff]
      %v840 = vld [vmem:[%s327 + $0x28] sm:$0xff]
      %v841 = vld [vmem:[%s327 + $0x30] sm:$0xff]
      %v842 = vld [vmem:[%s327 + $0x38] sm:$0xff]
      %v843 = vadd.f32 %v807, %v835
      %v844 = vadd.f32 %v826, %v836
      %v845 = vadd.f32 %v809, %v837
      %v846 = vadd.f32 %v828, %v838
      %v847 = vadd.f32 %v812, %v839
      %v848 = vadd.f32 %v831, %v840
      %v849 = vadd.f32 %v814, %v841
      %v850 = vadd.f32 %v833, %v842
      %v851 = vmax.f32 %v843, 0.0
      %v852 = vmax.f32 %v844, 0.0
      %v853 = vmax.f32 %v845, 0.0
      %v854 = vmax.f32 %v846, 0.0
      %v855 = vmax.f32 %v847, 0.0
      %v856 = vmax.f32 %v848, 0.0
      %v857 = vmax.f32 %v849, 0.0
      %v858 = vmax.f32 %v850, 0.0
      %859 = vst [vmem:[%s332] sm:$0xff] %v851
      %860 = vst [vmem:[%s332 + $0x8] sm:$0xff] %v852
      %861 = vst [vmem:[%s332 + $0x10] sm:$0xff] %v853
      %862 = vst [vmem:[%s332 + $0x18] sm:$0xff] %v854
      %863 = vst [vmem:[%s332 + $0x20] sm:$0xff] %v855
      %864 = vst [vmem:[%s332 + $0x28] sm:$0xff] %v856
      %865 = vst [vmem:[%s332 + $0x30] sm:$0xff] %v857
      %866 = vst [vmem:[%s332 + $0x38] sm:$0xff] %v858
      %p867 = scmp.lt.s32.totalorder %s20, 1
      %s868 = scalar_select %p867, %s20, 1
      %s869 = smul.addr %s868, 8
      %s870 = smul.addr %s869, 8
      %s871 = scalar_lea.vmem %s9, %s870
      // Predicated region
      $region57: #{bottleneck_forward.1} parent=55 // pred_check
        %p872 = pneg %p232
      $region58: #{bottleneck_forward.1} parent=55 // pred_check_branch
        %874 = sbr.rel (%p872) target = $region60
      $region59: #{bottleneck_forward.1} parent=55 // pred_region
        _
      $region60: #{bottleneck_forward.1} parent=55 // pred_fallthru
        _
    $region56: #{bottleneck_forward.1} parent=5 // pred_fallthru
      _
    %p875 = scmp.le.s32.totalorder 2, %s15
    // Predicated region
    $region61: #{bottleneck_forward.1} parent=5 // pred_check
      %p876 = pneg %p875
    $region62: #{bottleneck_forward.1} parent=5 // pred_check_branch
      %878 = sbr.rel (%p876) target = $region64
    $region63: #{bottleneck_forward.1} parent=5 // pred_region
      %s879 = ssub.s32 %s15, 2
      // Predicated region
      $region65: #{bottleneck_forward.1} parent=63 // pred_check
        %p880 = pneg %p238
      $region66: #{bottleneck_forward.1} parent=63 // pred_check_branch
        %882 = sbr.rel (%p880) target = $region68
      $region67: #{bottleneck_forward.1} parent=63 // pred_region
        %p883 = scmp.lt.s32.totalorder %s21, 1
        %s884 = scalar_select %p883, %s21, 1
        %s885 = smul.addr %s884, 8
        %s886 = smul.addr %s885, 8
        %s887 = scalar_lea.vmem %s9, %s886
      $region68: #{bottleneck_forward.1} parent=63 // pred_fallthru
        _
    $region64: #{bottleneck_forward.1} parent=5 // pred_fallthru
      _
  $region6: #{bottleneck_forward.1} parent=0 // loop_footer
    %s19 = sadd.s32 1, %s15
  $region7: #{bottleneck_forward.1} parent=0 // loop_footer_branch
    %14 = sbr.rel target = $region3
  $region8: #{bottleneck_forward.1} parent=0 // loop_exit
    _

</llo_original>
